<compile_context>
chip_gen: v7x
topology: tpu7x:2x2x1
jax: 0.10.0
libtpu: 0.0.40
codegen_flags: <defaults>
</compile_context>

<pallas_src>
import functools

import jax
import jax.numpy as jnp
from jax.experimental import pallas as pl
from jax.experimental.pallas import tpu as pltpu


def _round_up(x, m):
    return (x + m - 1) // m * m


# -----------------------------------------------------------------------------
# Pallas kernel: fused RPNHead forward for one (batch-block, L-tile) step.
#   t     = relu(conv1d(x, W_conv, b_conv, k=3, pad=1))
#   heads = [cls_logits(t), bbox_pred(t)]          (fused 1x1 convs)
# computed in (rows = nb*tl, cols = channels) orientation on the MXU.
# -----------------------------------------------------------------------------
def _rpn_head_kernel(x_ref, xprev_ref, xnext_ref, wconv_ref, wheads_ref,
                     bias_ref, out_ref, *, L, tl, halo_rows, A):
    nb = x_ref.shape[0]
    C = x_ref.shape[2]
    j = pl.program_id(1)

    # Single in-kernel bf16 cast (no wrapper pre-cast pass over HBM).
    x = x_ref[...].astype(jnp.bfloat16)                                # (nb, tl, C)
    prev_row = xprev_ref[:, halo_rows - 1:halo_rows, :].astype(jnp.bfloat16)  # (nb,1,C)
    next_row = xnext_ref[:, 0:1, :].astype(jnp.bfloat16)                      # (nb,1,C)

    # Column position masks only (broadcast inside jnp.where).
    loc = jax.lax.broadcasted_iota(jnp.int32, (nb, tl, 1), 1)
    glob = loc + j * tl
    zero = jnp.zeros((), jnp.bfloat16)

    # Shifted neighbours: rolls along the L axis never mix batch elements;
    # tile-edge rows come from the 1-row halos, image-edge rows are zeroed
    # (conv padding=1).
    x_prev = jnp.where(glob == 0, zero,
                       jnp.where(loc == 0, prev_row, jnp.roll(x, 1, axis=1)))
    x_next = jnp.where(glob == L - 1, zero,
                       jnp.where(loc == tl - 1, next_row, jnp.roll(x, -1, axis=1)))

    rows = nb * tl
    x2 = x.reshape(rows, C)
    xp2 = x_prev.reshape(rows, C)
    xn2 = x_next.reshape(rows, C)

    bias = bias_ref[...]                                   # (1, C + 3A) f32

    # k=3 conv as three accumulating MXU matmuls (no (rows, 3C) im2col buffer).
    t = jnp.dot(xp2, wconv_ref[0], preferred_element_type=jnp.float32)
    t = t + jnp.dot(x2, wconv_ref[1], preferred_element_type=jnp.float32)
    t = t + jnp.dot(xn2, wconv_ref[2], preferred_element_type=jnp.float32)
    t = jnp.maximum(t + bias[:, :C], 0.0)                  # conv bias + ReLU

    # Fused cls_logits + bbox_pred heads: one (rows, C) @ (C, 3A) matmul and
    # one fused output store; split happens in the wrapper.
    heads = jnp.dot(t.astype(jnp.bfloat16), wheads_ref[...],
                    preferred_element_type=jnp.float32)
    heads = heads + bias[:, C:]
    out_ref[...] = heads.reshape(nb, tl, 3 * A).astype(out_ref.dtype)


# -----------------------------------------------------------------------------
# Tile selection from a VMEM byte budget (targets ~1024 matmul rows per step,
# >=2 parallel grid steps for v7x's second TensorCore).
# -----------------------------------------------------------------------------
_VMEM_BUDGET = 24 << 20      # conservative live-VMEM budget (fits v7x 64 MiB)


def _pick_tiles(N, L, C, out_w, target_rows=1024):
    lane_c = _round_up(C, 128)
    lane_o = _round_up(out_w, 128)
    # Rough bytes per matmul row: double-buffered f32 feature block, bf16
    # x/x_prev/x_next, f32 conv acc, bf16 relu(t), f32 heads, double-buffered
    # f32 output block.
    per_row = (2 * 4 + 3 * 2 + 4 + 2) * lane_c + (4 + 2 * 4) * lane_o
    rows = max(8, min(target_rows, _VMEM_BUDGET // per_row))

    if rows >= L:
        tl = L
    else:
        tl = max(8, (rows // 8) * 8)          # multiple of 8 sublanes
    nb = max(1, min(N, rows // tl))
    # Keep >= 2 parallel grid steps where possible (v7x has 2 TensorCores).
    while nb > 1 and pl.cdiv(N, nb) * pl.cdiv(L, tl) < 2:
        nb -= 1
    return nb, tl


def _vmem_limit_bytes(nb, tl, hs, C, out_w):
    lane_c = _round_up(C, 128)
    lane_o = _round_up(out_w, 128)
    rows = nb * tl
    est = (2 * nb * tl * lane_c * 4                 # feature block (double buf)
           + 2 * 2 * nb * hs * lane_c * 4           # two halo blocks (double buf)
           + rows * ((3 * 2 + 4 + 2) * lane_c + 4 * lane_o)   # in-kernel temps
           + 2 * rows * lane_o * 4                  # output block (double buf)
           + 2 * 3 * C * lane_c * 2                 # conv weights
           + 2 * C * lane_o * 2                     # fused head weights
           + 2 * 8 * _round_up(C + out_w, 128) * 4)  # fused bias row
    return int(min(max(2 * est, 32 << 20), 48 << 20))


# -----------------------------------------------------------------------------
# Wrapper: RPNHead forward.
# -----------------------------------------------------------------------------
def rpn_head_forward(features_nlc, params):
    """features_nlc: (N, L, C) -- the layout at the PyTorch call site (before
    its NCL transpose).  Returns the fused head output (N, L, 3A) float32:
    channels [0:A] are cls logits, [A:3A] are bbox deltas, already in the
    (n, l, anchor[, coord]) order that permute_and_flatten produces."""
    N, L, C = features_nlc.shape
    A = params["w_cls"].shape[0]
    out_w = 3 * A

    nb, tl = _pick_tiles(N, L, C, out_w)
    n_bt = pl.cdiv(N, nb)
    n_lt = pl.cdiv(L, tl)
    hs = min(8, L)                     # halo block sublane size

    # Small constant operands are re-laid-out / cast once in the wrapper; the
    # big feature tensor is NOT pre-cast (kernel casts to bf16 in VMEM).
    w_conv3 = jnp.transpose(params["w_conv"], (2, 1, 0)).astype(jnp.bfloat16)  # (3,Cin,Cout)
    w_heads = jnp.concatenate([params["w_cls"], params["w_box"]],
                              axis=0).T.astype(jnp.bfloat16)                   # (C, 3A)
    bias = jnp.concatenate([params["b_conv"], params["b_cls"],
                            params["b_box"]]).astype(jnp.float32)[None, :]     # (1, C+3A)

    if n_lt == 1:
        prev_map = lambda i, j: (i, 0, 0)      # halo content fully masked
        next_map = lambda i, j: (i, 0, 0)
    else:
        t8 = tl // hs                          # tl is a multiple of 8 here
        max_blk = pl.cdiv(L, hs) - 1
        prev_map = lambda i, j: (i, jnp.maximum(j * t8 - 1, 0), 0)
        next_map = lambda i, j: (i, jnp.minimum((j + 1) * t8, max_blk), 0)

    kernel = functools.partial(_rpn_head_kernel, L=L, tl=tl, halo_rows=hs, A=A)

    heads = pl.pallas_call(
        kernel,
        out_shape=jax.ShapeDtypeStruct((N, L, out_w), jnp.float32),
        grid=(n_bt, n_lt),
        in_specs=[
            pl.BlockSpec((nb, tl, C), lambda i, j: (i, j, 0)),   # feature tile
            pl.BlockSpec((nb, hs, C), prev_map),                 # prev-row halo
            pl.BlockSpec((nb, hs, C), next_map),                 # next-row halo
            # Constant operands below.
            # TODO(synk): pipeline_mode=pl.Buffered(1) would drop their second
            # VMEM buffer (worth ~1 MiB at C=256 on v7x).
            pl.BlockSpec((3, C, C), lambda i, j: (0, 0, 0)),     # conv weights
            pl.BlockSpec((C, out_w), lambda i, j: (0, 0)),       # fused head W
            pl.BlockSpec((1, C + out_w), lambda i, j: (0, 0)),   # fused biases
        ],
        out_specs=pl.BlockSpec((nb, tl, out_w), lambda i, j: (i, j, 0)),
        compiler_params=pltpu.CompilerParams(
            dimension_semantics=("parallel", "parallel"),
            vmem_limit_bytes=_vmem_limit_bytes(nb, tl, hs, C, out_w)),
    )(features_nlc, features_nlc, features_nlc, w_conv3, w_heads, bias)
    return heads


# -----------------------------------------------------------------------------
# RegionProposalNetwork forward (inference-side compute that is defined).
# -----------------------------------------------------------------------------
def rpn_forward(features_nlc, params):
    heads = rpn_head_forward(features_nlc, params)      # (N, L, 3A) f32
    N, L, w = heads.shape
    A = w // 3
    num_windows = A * L   # == s1 * s2 of the PyTorch (N, A, L) objectness

    # Kernel already emits (n, l, anchor[, coord]) ordering, so this tiny
    # split + reshape IS concat_box_prediction_layers.
    objectness = heads[..., :A].reshape(N * L * A, 1)
    bbox_pred_delta = heads[..., A:].reshape(N * L * A, 2)
    scores = jax.nn.sigmoid(objectness)

    # TODO(synk): WindowsGenerator / BoxCoder.decode+encode / clip / NMS /
    # topk filter_proposals and the training loss (Matcher,
    # BalancedPositiveNegtiveSampler) depend on undefined helper classes and
    # data-dependent control flow; not translated.
    return objectness, bbox_pred_delta, scores, num_windows


# -----------------------------------------------------------------------------
# Pure-JAX reference (mirrors the kernel's bf16-operand / f32-accum math).
# -----------------------------------------------------------------------------
def _rpn_head_reference(features_nlc, params):
    f32 = jnp.float32
    hp = jax.lax.Precision.HIGHEST
    x = features_nlc.astype(jnp.bfloat16).astype(f32)
    w = params["w_conv"].astype(jnp.bfloat16).astype(f32)
    w_cls = params["w_cls"].astype(jnp.bfloat16).astype(f32)
    w_box = params["w_box"].astype(jnp.bfloat16).astype(f32)
    N, L, C = x.shape
    x_prev = jnp.pad(x, ((0, 0), (1, 0), (0, 0)))[:, :L, :]
    x_next = jnp.pad(x, ((0, 0), (0, 1), (0, 0)))[:, 1:, :]
    t = (jnp.einsum("nlc,oc->nlo", x_prev, w[:, :, 0], precision=hp)
         + jnp.einsum("nlc,oc->nlo", x, w[:, :, 1], precision=hp)
         + jnp.einsum("nlc,oc->nlo", x_next, w[:, :, 2], precision=hp)
         + params["b_conv"][None, None, :])
    t = jnp.maximum(t, 0.0).astype(jnp.bfloat16).astype(f32)
    logits = (jnp.einsum("nlc,ac->nla", t, w_cls, precision=hp)
              + params["b_cls"][None, None, :])
    bbox = (jnp.einsum("nlc,ac->nla", t, w_box, precision=hp)
            + params["b_box"][None, None, :])
    return logits, bbox


def init_params(key, in_channels, num_anchors):
    ks = jax.random.split(key, 6)
    return {
        "w_conv": 0.01 * jax.random.normal(
            ks[0], (in_channels, in_channels, 3), jnp.float32),
        "b_conv": 0.01 * jax.random.normal(ks[1], (in_channels,), jnp.float32),
        "w_cls": 0.01 * jax.random.normal(
            ks[2], (num_anchors, in_channels), jnp.float32),
        "b_cls": 0.01 * jax.random.normal(ks[3], (num_anchors,), jnp.float32),
        "w_box": 0.01 * jax.random.normal(
            ks[4], (2 * num_anchors, in_channels), jnp.float32),
        "b_box": 0.01 * jax.random.normal(
            ks[5], (2 * num_anchors,), jnp.float32),
    }


def _check(features, params):
    N, L, C = features.shape
    A = params["w_cls"].shape[0]
    objectness, bbox_delta, scores, num_windows = jax.jit(
        rpn_forward)(features, params)
    jax.block_until_ready((objectness, bbox_delta, scores))

    # Shape semantics of concat_box_prediction_layers.
    assert objectness.shape == (N * L * A, 1)
    assert bbox_delta.shape == (N * L * A, 2)
    assert int(num_windows) == A * L

    # Numerical check against the pure-JAX reference.
    logits_ref, bbox_ref = _rpn_head_reference(features, params)
    obj_ref = logits_ref.reshape(N * L * A, 1)
    box_ref = bbox_ref.reshape(N * L * A, 2)
    assert float(jnp.max(jnp.abs(objectness - obj_ref))) < 1e-3
    assert float(jnp.max(jnp.abs(bbox_delta - box_ref))) < 1e-3


if __name__ == "__main__":
    key = jax.random.PRNGKey(0)
    k_feat, k_par, k_feat2 = jax.random.split(key, 3)

    # Small demo config (single L tile, batch-parallel grid).
    N, L, C_IN, A = 2, 16, 32, 3
    params = init_params(k_par, C_IN, A)
    features = jax.random.normal(k_feat, (N, L, C_IN), jnp.float32)
    _check(features, params)

    # Larger-L config that exercises the L-tiling + halo path (grid (2, 2)).
    L2 = 2048
    features2 = jax.random.normal(k_feat2, (N, L2, C_IN), jnp.float32)
    _check(features2, params)

    print("KERNEL_OK")
</pallas_src>

<mosaic_0001>
module attributes {stable_mosaic.version = 11 : i64} {
  func.func @_rpn_head_kernel(%arg0: i32, %arg1: i32, %arg2: memref<1x16x32xf32, #tpu.memory_space<vmem>>, %arg3: memref<1x8x32xf32, #tpu.memory_space<vmem>>, %arg4: memref<1x8x32xf32, #tpu.memory_space<vmem>>, %arg5: memref<3x32x32xbf16, #tpu.memory_space<vmem>>, %arg6: memref<32x9xbf16, #tpu.memory_space<vmem>>, %arg7: memref<1x41xf32, #tpu.memory_space<vmem>>, %arg8: memref<1x16x9xf32, #tpu.memory_space<vmem>>) attributes {dimension_semantics = [#tpu.dimension_semantics<parallel>, #tpu.dimension_semantics<parallel>], iteration_bounds = array<i64: 2, 1>, scalar_prefetch = 0 : i64, scratch_operands = 0 : i64, tpu.core_type = #tpu.core_type<tc>, window_params = [{transform_indices = @transform_0, window_bounds = array<i64: 1, 16, 32>}, {transform_indices = @transform_1, window_bounds = array<i64: 1, 8, 32>}, {transform_indices = @transform_2, window_bounds = array<i64: 1, 8, 32>}, {pipeline_mode = #tpu.pipeline_mode<synchronous>, transform_indices = @transform_3, window_bounds = array<i64: 3, 32, 32>}, {pipeline_mode = #tpu.pipeline_mode<synchronous>, transform_indices = @transform_4, window_bounds = array<i64: 32, 9>}, {pipeline_mode = #tpu.pipeline_mode<synchronous>, transform_indices = @transform_5, window_bounds = array<i64: 1, 41>}, {transform_indices = @transform_6, window_bounds = array<i64: 1, 16, 9>}]} {
    %c0 = arith.constant 0 : index
    %c0_0 = arith.constant 0 : index
    %c0_1 = arith.constant 0 : index
    %0 = vector.load %arg2[%c0, %c0_0, %c0_1] : memref<1x16x32xf32, #tpu.memory_space<vmem>>, vector<1x16x32xf32>
    %1 = arith.truncf %0 : vector<1x16x32xf32> to vector<1x16x32xbf16>
    %c0_2 = arith.constant 0 : index
    %c7 = arith.constant 7 : index
    %c0_3 = arith.constant 0 : index
    %2 = vector.load %arg3[%c0_2, %c7, %c0_3] : memref<1x8x32xf32, #tpu.memory_space<vmem>>, vector<1x1x32xf32>
    %3 = arith.truncf %2 : vector<1x1x32xf32> to vector<1x1x32xbf16>
    %c0_4 = arith.constant 0 : index
    %c0_5 = arith.constant 0 : index
    %c0_6 = arith.constant 0 : index
    %4 = vector.load %arg4[%c0_4, %c0_5, %c0_6] : memref<1x8x32xf32, #tpu.memory_space<vmem>>, vector<1x1x32xf32>
    %5 = arith.truncf %4 : vector<1x1x32xf32> to vector<1x1x32xbf16>
    %6 = tpu.iota {dimensions = array<i32: 1>} : vector<1x16x1xi32>
    %c16_i32 = arith.constant 16 : i32
    %7 = arith.muli %arg1, %c16_i32 : i32
    %8 = vector.broadcast %7 : i32 to vector<1x16x1xi32>
    %9 = arith.addi %6, %8 : vector<1x16x1xi32>
    %c0_i32 = arith.constant 0 : i32
    %10 = vector.broadcast %c0_i32 : i32 to vector<1x16x1xi32>
    %11 = arith.cmpi eq, %9, %10 : vector<1x16x1xi32>
    %c0_i32_7 = arith.constant 0 : i32
    %12 = vector.broadcast %c0_i32_7 : i32 to vector<1x16x1xi32>
    %13 = arith.cmpi eq, %6, %12 : vector<1x16x1xi32>
    %14 = vector.extract_strided_slice %1 {offsets = [0, 15, 0], sizes = [1, 1, 32], strides = [1, 1, 1]} : vector<1x16x32xbf16> to vector<1x1x32xbf16>
    %15 = vector.extract_strided_slice %1 {offsets = [0, 0, 0], sizes = [1, 15, 32], strides = [1, 1, 1]} : vector<1x16x32xbf16> to vector<1x15x32xbf16>
    %16 = tpu.concatenate %14, %15 in 1 : vector<1x1x32xbf16>, vector<1x15x32xbf16> -> vector<1x16x32xbf16>
    %17 = vector.shape_cast %13 : vector<1x16x1xi1> to vector<1x16x1xi1>
    %18 = vector.broadcast %17 : vector<1x16x1xi1> to vector<1x16x32xi1>
    %19 = vector.shape_cast %3 : vector<1x1x32xbf16> to vector<1x1x32xbf16>
    %20 = vector.broadcast %19 : vector<1x1x32xbf16> to vector<1x16x32xbf16>
    %21 = arith.select %18, %20, %16 : vector<1x16x32xi1>, vector<1x16x32xbf16>
    %cst = arith.constant 0.000000e+00 : bf16
    %22 = vector.shape_cast %11 : vector<1x16x1xi1> to vector<1x16x1xi1>
    %23 = vector.broadcast %22 : vector<1x16x1xi1> to vector<1x16x32xi1>
    %24 = vector.broadcast %cst : bf16 to vector<1x16x32xbf16>
    %25 = arith.select %23, %24, %21 : vector<1x16x32xi1>, vector<1x16x32xbf16>
    %c15_i32 = arith.constant 15 : i32
    %26 = vector.broadcast %c15_i32 : i32 to vector<1x16x1xi32>
    %27 = arith.cmpi eq, %9, %26 : vector<1x16x1xi32>
    %c15_i32_8 = arith.constant 15 : i32
    %28 = vector.broadcast %c15_i32_8 : i32 to vector<1x16x1xi32>
    %29 = arith.cmpi eq, %6, %28 : vector<1x16x1xi32>
    %30 = vector.extract_strided_slice %1 {offsets = [0, 1, 0], sizes = [1, 15, 32], strides = [1, 1, 1]} : vector<1x16x32xbf16> to vector<1x15x32xbf16>
    %31 = vector.extract_strided_slice %1 {offsets = [0, 0, 0], sizes = [1, 1, 32], strides = [1, 1, 1]} : vector<1x16x32xbf16> to vector<1x1x32xbf16>
    %32 = tpu.concatenate %30, %31 in 1 : vector<1x15x32xbf16>, vector<1x1x32xbf16> -> vector<1x16x32xbf16>
    %33 = vector.shape_cast %29 : vector<1x16x1xi1> to vector<1x16x1xi1>
    %34 = vector.broadcast %33 : vector<1x16x1xi1> to vector<1x16x32xi1>
    %35 = vector.shape_cast %5 : vector<1x1x32xbf16> to vector<1x1x32xbf16>
    %36 = vector.broadcast %35 : vector<1x1x32xbf16> to vector<1x16x32xbf16>
    %37 = arith.select %34, %36, %32 : vector<1x16x32xi1>, vector<1x16x32xbf16>
    %cst_9 = arith.constant 0.000000e+00 : bf16
    %38 = vector.shape_cast %27 : vector<1x16x1xi1> to vector<1x16x1xi1>
    %39 = vector.broadcast %38 : vector<1x16x1xi1> to vector<1x16x32xi1>
    %40 = vector.broadcast %cst_9 : bf16 to vector<1x16x32xbf16>
    %41 = arith.select %39, %40, %37 : vector<1x16x32xi1>, vector<1x16x32xbf16>
    %42 = vector.shape_cast %1 : vector<1x16x32xbf16> to vector<16x32xbf16>
    %43 = vector.shape_cast %25 : vector<1x16x32xbf16> to vector<16x32xbf16>
    %44 = vector.shape_cast %41 : vector<1x16x32xbf16> to vector<16x32xbf16>
    %c0_10 = arith.constant 0 : index
    %c0_11 = arith.constant 0 : index
    %45 = vector.load %arg7[%c0_10, %c0_11] : memref<1x41xf32, #tpu.memory_space<vmem>>, vector<1x41xf32>
    %c0_12 = arith.constant 0 : index
    %c0_13 = arith.constant 0 : index
    %c0_14 = arith.constant 0 : index
    %46 = vector.load %arg5[%c0_12, %c0_13, %c0_14] : memref<3x32x32xbf16, #tpu.memory_space<vmem>>, vector<1x32x32xbf16>
    %47 = vector.shape_cast %46 : vector<1x32x32xbf16> to vector<32x32xbf16>
    %cst_15 = arith.constant dense<0.000000e+00> : vector<16x32xf32>
    %48 = tpu.matmul %43, %47, %cst_15 {dimension_numbers = #tpu.dot_dimension_numbers<[1], [0], [0], [1], [0, 0, 1, 1], [], []>} : vector<16x32xbf16>, vector<32x32xbf16>, vector<16x32xf32> -> vector<16x32xf32>
    %c1 = arith.constant 1 : index
    %c0_16 = arith.constant 0 : index
    %c0_17 = arith.constant 0 : index
    %49 = vector.load %arg5[%c1, %c0_16, %c0_17] : memref<3x32x32xbf16, #tpu.memory_space<vmem>>, vector<1x32x32xbf16>
    %50 = vector.shape_cast %49 : vector<1x32x32xbf16> to vector<32x32xbf16>
    %cst_18 = arith.constant dense<0.000000e+00> : vector<16x32xf32>
    %51 = tpu.matmul %42, %50, %cst_18 {dimension_numbers = #tpu.dot_dimension_numbers<[1], [0], [0], [1], [0, 0, 1, 1], [], []>} : vector<16x32xbf16>, vector<32x32xbf16>, vector<16x32xf32> -> vector<16x32xf32>
    %52 = arith.addf %48, %51 : vector<16x32xf32>
    %c2 = arith.constant 2 : index
    %c0_19 = arith.constant 0 : index
    %c0_20 = arith.constant 0 : index
    %53 = vector.load %arg5[%c2, %c0_19, %c0_20] : memref<3x32x32xbf16, #tpu.memory_space<vmem>>, vector<1x32x32xbf16>
    %54 = vector.shape_cast %53 : vector<1x32x32xbf16> to vector<32x32xbf16>
    %cst_21 = arith.constant dense<0.000000e+00> : vector<16x32xf32>
    %55 = tpu.matmul %44, %54, %cst_21 {dimension_numbers = #tpu.dot_dimension_numbers<[1], [0], [0], [1], [0, 0, 1, 1], [], []>} : vector<16x32xbf16>, vector<32x32xbf16>, vector<16x32xf32> -> vector<16x32xf32>
    %56 = arith.addf %52, %55 : vector<16x32xf32>
    %57 = vector.extract_strided_slice %45 {offsets = [0, 0], sizes = [1, 32], strides = [1, 1]} : vector<1x41xf32> to vector<1x32xf32>
    %58 = vector.broadcast %57 : vector<1x32xf32> to vector<16x32xf32>
    %59 = arith.addf %56, %58 : vector<16x32xf32>
    %cst_22 = arith.constant 0.000000e+00 : f32
    %60 = vector.broadcast %cst_22 : f32 to vector<16x32xf32>
    %61 = arith.maximumf %59, %60 : vector<16x32xf32>
    %62 = arith.truncf %61 : vector<16x32xf32> to vector<16x32xbf16>
    %c0_23 = arith.constant 0 : index
    %c0_24 = arith.constant 0 : index
    %63 = vector.load %arg6[%c0_23, %c0_24] : memref<32x9xbf16, #tpu.memory_space<vmem>>, vector<32x9xbf16>
    %cst_25 = arith.constant dense<0.000000e+00> : vector<16x9xf32>
    %64 = tpu.matmul %62, %63, %cst_25 {dimension_numbers = #tpu.dot_dimension_numbers<[1], [0], [0], [1], [0, 0, 1, 1], [], []>} : vector<16x32xbf16>, vector<32x9xbf16>, vector<16x9xf32> -> vector<16x9xf32>
    %65 = vector.extract_strided_slice %45 {offsets = [0, 32], sizes = [1, 9], strides = [1, 1]} : vector<1x41xf32> to vector<1x9xf32>
    %66 = vector.broadcast %65 : vector<1x9xf32> to vector<16x9xf32>
    %67 = arith.addf %64, %66 : vector<16x9xf32>
    %68 = vector.shape_cast %67 : vector<16x9xf32> to vector<1x16x9xf32>
    %c0_26 = arith.constant 0 : index
    %c0_27 = arith.constant 0 : index
    %c0_28 = arith.constant 0 : index
    %69 = vector.load %arg8[%c0_26, %c0_27, %c0_28] : memref<1x16x9xf32, #tpu.memory_space<vmem>>, vector<1x16x9xf32>
    tpu.vector_store %arg8[%c0_26, %c0_27, %c0_28], %68 {strides = array<i32>} : memref<1x16x9xf32, #tpu.memory_space<vmem>>, vector<1x16x9xf32>,
    return
  }
  func.func @transform_0(%arg0: i32, %arg1: i32) -> (i32, i32, i32) {
    %c0_i32 = arith.constant 0 : i32
    %c0_i32_0 = arith.constant 0 : i32
    return %arg0, %arg1, %c0_i32 : i32, i32, i32
  }
  func.func @transform_1(%arg0: i32, %arg1: i32) -> (i32, i32, i32) {
    %c0_i32 = arith.constant 0 : i32
    %c0_i32_0 = arith.constant 0 : i32
    %c0_i32_1 = arith.constant 0 : i32
    return %arg0, %c0_i32, %c0_i32_0 : i32, i32, i32
  }
  func.func @transform_2(%arg0: i32, %arg1: i32) -> (i32, i32, i32) {
    %c0_i32 = arith.constant 0 : i32
    %c0_i32_0 = arith.constant 0 : i32
    %c0_i32_1 = arith.constant 0 : i32
    return %arg0, %c0_i32, %c0_i32_0 : i32, i32, i32
  }
  func.func @transform_3(%arg0: i32, %arg1: i32) -> (i32, i32, i32) {
    %c0_i32 = arith.constant 0 : i32
    %c0_i32_0 = arith.constant 0 : i32
    %c0_i32_1 = arith.constant 0 : i32
    %c0_i32_2 = arith.constant 0 : i32
    return %c0_i32, %c0_i32_0, %c0_i32_1 : i32, i32, i32
  }
  func.func @transform_4(%arg0: i32, %arg1: i32) -> (i32, i32) {
    %c0_i32 = arith.constant 0 : i32
    %c0_i32_0 = arith.constant 0 : i32
    %c0_i32_1 = arith.constant 0 : i32
    return %c0_i32, %c0_i32_0 : i32, i32
  }
  func.func @transform_5(%arg0: i32, %arg1: i32) -> (i32, i32) {
    %c0_i32 = arith.constant 0 : i32
    %c0_i32_0 = arith.constant 0 : i32
    %c0_i32_1 = arith.constant 0 : i32
    return %c0_i32, %c0_i32_0 : i32, i32
  }
  func.func @transform_6(%arg0: i32, %arg1: i32) -> (i32, i32, i32) {
    %c0_i32 = arith.constant 0 : i32
    %c0_i32_0 = arith.constant 0 : i32
    return %arg0, %arg1, %c0_i32 : i32, i32, i32
  }
}

</mosaic_0001>

<llo_original>
// kernel: rpn_forward.1
$region0: #{rpn_forward.1}
  #allocation0 [shape = 'u32[]', space=smem, size = 0x4, offset = 0x4, fixed_abs, tag = 'smem constant byte address 0x4 - core index']
  #allocation1 [shape = 'u32[144,128]{1,0:T(1,128)}', space=vmem, size = 0x12000, scoped, tag = 'internal scratch']
  %s0 = inlined_call_operand.vmem [shape: f32[2,16,32], index: 0, kind: input, shape index: {}, may-alias: {0,1,2}]
  %s1 = inlined_call_operand.vmem [shape: f32[2,16,32], index: 1, kind: input, shape index: {}, may-alias: {0,1,2}]
  %s2 = inlined_call_operand.vmem [shape: f32[2,16,32], index: 2, kind: input, shape index: {}, may-alias: {0,1,2}]
  %s3 = inlined_call_operand.vmem [shape: bf16[3,32,32], index: 3, kind: input, shape index: {}]
  %s4 = inlined_call_operand.vmem [shape: bf16[32,9], index: 4, kind: input, shape index: {}]
  %s5 = inlined_call_operand.vmem [shape: f32[1,41], index: 5, kind: input, shape index: {}]
  %s6 = inlined_call_operand.vmem [shape: f32[2,16,9], index: 6, kind: output, shape index: {}]
  %s7 = sld [smem:[#allocation0]]
  $region57: #{rpn_forward.1} parent=0
    _
  %s9 = ssub.s32 1, %s7
  %s10 = scalar_select 0, %s9, %s7
  loop: start=0, step=1, limit=4
  $region2: #{rpn_forward.1} parent=0 // loop_pre_header
    _
  $region3: #{rpn_forward.1} parent=0 // loop_header
    %s12 = sphi 0, %s16
    %p13 = scmp.ge.s32.totalorder %s12, 4
    %s19 = sphi 0, %s31
    %s20 = sphi 0, %s27
    %s21 = sphi 0, %s19
    %s22 = sphi 0, %s20
    %s23 = sphi 0, %s21
    %s24 = sphi 0, %s22
    %s36 = sphi 0, %s38
    %s39 = sphi 0, %s36
    %s40 = sphi 0, %s39
    %s56 = sphi 0, %s40
    %s62 = sphi 0, %s64
    %s65 = sphi 0, %s62
    %s66 = sphi 0, %s65
    %s82 = sphi 0, %s66
    %s88 = sphi 0, %s90
    %s91 = sphi 0, %s88
    %s92 = sphi 0, %s91
    %s108 = sphi 0, %s92
    %s112 = sphi 0, %s112
    %s114 = sphi 0, %s112
    %s115 = sphi 0, %s114
    %s129 = sphi 0, %s115
    %s133 = sphi 0, %s133
    %s135 = sphi 0, %s133
    %s136 = sphi 0, %s135
    %s150 = sphi 0, %s136
    %s154 = sphi 0, %s154
    %s156 = sphi 0, %s154
    %s157 = sphi 0, %s156
    %s171 = sphi 0, %s157
    %s179 = sphi 0, %s181
    %s182 = sphi 0, %s179
    %s183 = sphi 0, %s182
    %s199 = sphi 0, %s183
  $region4: #{rpn_forward.1} parent=0 // loop_header_branch
    %15 = sbr.rel (%p13) target = $region8
  $region5: #{rpn_forward.1} parent=0 // loop_body
    %s17 = ssub.s32 %s12, 1
    %s18 = ssub.s32 %s12, 2
    %s25 = sadd.s32 1, %s20
    %p26 = scmp.ge.s32.totalorder %s25, 1
    %s27 = scalar_select %p26, 0, %s25
    %s28 = sadd.s32 1, %s19
    %s29 = scalar_select %p26, %s28, %s19
    %p30 = scmp.ge.s32.totalorder %s29, 2
    %s31 = scalar_select %p30, 0, %s29
    %s32 = ssub.s32 %s19, %s31
    %s33 = ssub.s32 %s20, %s27
    %s34 = sor.u32 %s32, %s33
    %p35 = scmp.eq.s32.totalorder %s34, 0
    %s37 = sadd.s32 %s36, 1
    %s38 = scalar_select %p35, %s36, %s37
    %p41 = pneg %p35
    %p42 = scmp.eq.s32.totalorder %s12, 1
    %p43 = por %p41, %p42
    %p44 = scmp.ne.s32.totalorder %s36, %s39
    %p45 = scmp.eq.s32.totalorder %s12, 0
    %p46 = por %p44, %p45
    %p47 = scmp.ne.s32.totalorder %s36, %s39
    %p48 = scmp.eq.s32.totalorder %s17, 1
    %p49 = por %p47, %p48
    %p50 = scmp.ne.s32.totalorder %s39, %s40
    %p51 = scmp.eq.s32.totalorder %s17, 0
    %p52 = por %p50, %p51
    %p53 = scmp.ne.s32.totalorder %s39, %s40
    %p54 = scmp.eq.s32.totalorder %s18, 1
    %p55 = por %p53, %p54
    %p57 = scmp.ne.s32.totalorder %s40, %s56
    %p58 = scmp.eq.s32.totalorder %s18, 0
    %p59 = por %p57, %p58
    %s60 = ssub.s32 %s19, %s31
    %p61 = scmp.eq.s32.totalorder %s60, 0
    %s63 = sadd.s32 %s62, 1
    %s64 = scalar_select %p61, %s62, %s63
    %p67 = pneg %p61
    %p68 = scmp.eq.s32.totalorder %s12, 1
    %p69 = por %p67, %p68
    %p70 = scmp.ne.s32.totalorder %s62, %s65
    %p71 = scmp.eq.s32.totalorder %s12, 0
    %p72 = por %p70, %p71
    %p73 = scmp.ne.s32.totalorder %s62, %s65
    %p74 = scmp.eq.s32.totalorder %s17, 1
    %p75 = por %p73, %p74
    %p76 = scmp.ne.s32.totalorder %s65, %s66
    %p77 = scmp.eq.s32.totalorder %s17, 0
    %p78 = por %p76, %p77
    %p79 = scmp.ne.s32.totalorder %s65, %s66
    %p80 = scmp.eq.s32.totalorder %s18, 1
    %p81 = por %p79, %p80
    %p83 = scmp.ne.s32.totalorder %s66, %s82
    %p84 = scmp.eq.s32.totalorder %s18, 0
    %p85 = por %p83, %p84
    %s86 = ssub.s32 %s19, %s31
    %p87 = scmp.eq.s32.totalorder %s86, 0
    %s89 = sadd.s32 %s88, 1
    %s90 = scalar_select %p87, %s88, %s89
    %p93 = pneg %p87
    %p94 = scmp.eq.s32.totalorder %s12, 1
    %p95 = por %p93, %p94
    %p96 = scmp.ne.s32.totalorder %s88, %s91
    %p97 = scmp.eq.s32.totalorder %s12, 0
    %p98 = por %p96, %p97
    %p99 = scmp.ne.s32.totalorder %s88, %s91
    %p100 = scmp.eq.s32.totalorder %s17, 1
    %p101 = por %p99, %p100
    %p102 = scmp.ne.s32.totalorder %s91, %s92
    %p103 = scmp.eq.s32.totalorder %s17, 0
    %p104 = por %p102, %p103
    %p105 = scmp.ne.s32.totalorder %s91, %s92
    %p106 = scmp.eq.s32.totalorder %s18, 1
    %p107 = por %p105, %p106
    %p109 = scmp.ne.s32.totalorder %s92, %s108
    %p110 = scmp.eq.s32.totalorder %s18, 0
    %p111 = por %p109, %p110
    %s113 = sadd.s32 %s112, 1
    %p116 = scmp.eq.s32.totalorder %s12, 1
    %p117 = scmp.ne.s32.totalorder %s112, %s114
    %p118 = scmp.eq.s32.totalorder %s12, 0
    %p119 = por %p117, %p118
    %p120 = scmp.ne.s32.totalorder %s112, %s114
    %p121 = scmp.eq.s32.totalorder %s17, 1
    %p122 = por %p120, %p121
    %p123 = scmp.ne.s32.totalorder %s114, %s115
    %p124 = scmp.eq.s32.totalorder %s17, 0
    %p125 = por %p123, %p124
    %p126 = scmp.ne.s32.totalorder %s114, %s115
    %p127 = scmp.eq.s32.totalorder %s18, 1
    %p128 = por %p126, %p127
    %p130 = scmp.ne.s32.totalorder %s115, %s129
    %p131 = scmp.eq.s32.totalorder %s18, 0
    %p132 = por %p130, %p131
    %s134 = sadd.s32 %s133, 1
    %p137 = scmp.eq.s32.totalorder %s12, 1
    %p138 = scmp.ne.s32.totalorder %s133, %s135
    %p139 = scmp.eq.s32.totalorder %s12, 0
    %p140 = por %p138, %p139
    %p141 = scmp.ne.s32.totalorder %s133, %s135
    %p142 = scmp.eq.s32.totalorder %s17, 1
    %p143 = por %p141, %p142
    %p144 = scmp.ne.s32.totalorder %s135, %s136
    %p145 = scmp.eq.s32.totalorder %s17, 0
    %p146 = por %p144, %p145
    %p147 = scmp.ne.s32.totalorder %s135, %s136
    %p148 = scmp.eq.s32.totalorder %s18, 1
    %p149 = por %p147, %p148
    %p151 = scmp.ne.s32.totalorder %s136, %s150
    %p152 = scmp.eq.s32.totalorder %s18, 0
    %p153 = por %p151, %p152
    %s155 = sadd.s32 %s154, 1
    %p158 = scmp.eq.s32.totalorder %s12, 1
    %p159 = scmp.ne.s32.totalorder %s154, %s156
    %p160 = scmp.eq.s32.totalorder %s12, 0
    %p161 = por %p159, %p160
    %p162 = scmp.ne.s32.totalorder %s154, %s156
    %p163 = scmp.eq.s32.totalorder %s17, 1
    %p164 = por %p162, %p163
    %p165 = scmp.ne.s32.totalorder %s156, %s157
    %p166 = scmp.eq.s32.totalorder %s17, 0
    %p167 = por %p165, %p166
    %p168 = scmp.ne.s32.totalorder %s156, %s157
    %p169 = scmp.eq.s32.totalorder %s18, 1
    %p170 = por %p168, %p169
    %p172 = scmp.ne.s32.totalorder %s157, %s171
    %p173 = scmp.eq.s32.totalorder %s18, 0
    %p174 = por %p172, %p173
    %s175 = ssub.s32 %s19, %s31
    %s176 = ssub.s32 %s20, %s27
    %s177 = sor.u32 %s175, %s176
    %p178 = scmp.eq.s32.totalorder %s177, 0
    %s180 = sadd.s32 %s179, 1
    %s181 = scalar_select %p178, %s179, %s180
    %p184 = pneg %p178
    %p185 = scmp.eq.s32.totalorder %s12, 1
    %p186 = por %p184, %p185
    %p187 = scmp.ne.s32.totalorder %s179, %s182
    %p188 = scmp.eq.s32.totalorder %s12, 0
    %p189 = por %p187, %p188
    %p190 = scmp.ne.s32.totalorder %s179, %s182
    %p191 = scmp.eq.s32.totalorder %s17, 1
    %p192 = por %p190, %p191
    %p193 = scmp.ne.s32.totalorder %s182, %s183
    %p194 = scmp.eq.s32.totalorder %s17, 0
    %p195 = por %p193, %p194
    %p196 = scmp.ne.s32.totalorder %s182, %s183
    %p197 = scmp.eq.s32.totalorder %s18, 1
    %p198 = por %p196, %p197
    %p200 = scmp.ne.s32.totalorder %s183, %s199
    %p201 = scmp.eq.s32.totalorder %s18, 0
    %p202 = por %p200, %p201
    %p203 = scmp.le.s32.totalorder 1, %s12
    %p204 = scmp.lt.s32.totalorder %s12, 3
    %p205 = pnand %p203, %p204
    %p206 = pneg %p205
    // Predicated region
    $region9: #{rpn_forward.1} parent=5 // pred_check
      _
    $region10: #{rpn_forward.1} parent=5 // pred_check_branch
      %208 = sbr.rel (%p205) target = $region12
    $region11: #{rpn_forward.1} parent=5 // pred_region
      %s209 = ssub.s32 %s12, 1
      // Predicated region
      $region13: #{rpn_forward.1} parent=11 // pred_check
        %p210 = pneg %p125
      $region14: #{rpn_forward.1} parent=11 // pred_check_branch
        %212 = sbr.rel (%p210) target = $region16
      $region15: #{rpn_forward.1} parent=11 // pred_region
        _
      $region16: #{rpn_forward.1} parent=11 // pred_fallthru
        _
      // Predicated region
      $region17: #{rpn_forward.1} parent=11 // pred_check
        %p213 = pneg %p146
      $region18: #{rpn_forward.1} parent=11 // pred_check_branch
        %215 = sbr.rel (%p213) target = $region20
      $region19: #{rpn_forward.1} parent=11 // pred_region
        _
      $region20: #{rpn_forward.1} parent=11 // pred_fallthru
        _
      // Predicated region
      $region21: #{rpn_forward.1} parent=11 // pred_check
        %p216 = pneg %p167
      $region22: #{rpn_forward.1} parent=11 // pred_check_branch
        %218 = sbr.rel (%p216) target = $region24
      $region23: #{rpn_forward.1} parent=11 // pred_region
        _
      $region24: #{rpn_forward.1} parent=11 // pred_fallthru
        _
    $region12: #{rpn_forward.1} parent=5 // pred_fallthru
      _
    %p219 = scmp.lt.s32.totalorder %s12, 2
    // Predicated region
    $region25: #{rpn_forward.1} parent=5 // pred_check
      %p220 = pneg %p219
    $region26: #{rpn_forward.1} parent=5 // pred_check_branch
      %222 = sbr.rel (%p220) target = $region28
    $region27: #{rpn_forward.1} parent=5 // pred_region
      // Predicated region
      $region29: #{rpn_forward.1} parent=27 // pred_check
        %p223 = pneg %p46
      $region30: #{rpn_forward.1} parent=27 // pred_check_branch
        %225 = sbr.rel (%p223) target = $region32
      $region31: #{rpn_forward.1} parent=27 // pred_region
        %s226 = smul.u32 2, %s20
        %p227 = scmp.lt.s32.totalorder %s19, 1
        %s228 = scalar_select %p227, %s19, 1
        %p229 = scmp.lt.s32.totalorder %s226, 1
        %s230 = scalar_select %p229, %s226, 1
        %s231 = smul.addr %s228, 2
        %s232 = sadd.s32 %s230, %s231
        %s233 = smul.addr %s232, 8
        %s234 = scalar_lea.vmem %s0, %s233
        %s235 = smul.u32 2, %s20
      $region32: #{rpn_forward.1} parent=27 // pred_fallthru
        _
      // Predicated region
      $region33: #{rpn_forward.1} parent=27 // pred_check
        %p236 = pneg %p72
      $region34: #{rpn_forward.1} parent=27 // pred_check_branch
        %238 = sbr.rel (%p236) target = $region36
      $region35: #{rpn_forward.1} parent=27 // pred_region
        %p239 = scmp.lt.s32.totalorder %s19, 1
        %s240 = scalar_select %p239, %s19, 1
        %s241 = smul.addr %s240, 2
        %s242 = smul.addr %s241, 8
        %s243 = scalar_lea.vmem %s1, %s242
      $region36: #{rpn_forward.1} parent=27 // pred_fallthru
        _
      // Predicated region
      $region37: #{rpn_forward.1} parent=27 // pred_check
        %p244 = pneg %p98
      $region38: #{rpn_forward.1} parent=27 // pred_check_branch
        %246 = sbr.rel (%p244) target = $region40
      $region39: #{rpn_forward.1} parent=27 // pred_region
        %p247 = scmp.lt.s32.totalorder %s19, 1
        %s248 = scalar_select %p247, %s19, 1
        %s249 = smul.addr %s248, 2
        %s250 = smul.addr %s249, 8
        %s251 = scalar_lea.vmem %s2, %s250
      $region40: #{rpn_forward.1} parent=27 // pred_fallthru
        _
    $region28: #{rpn_forward.1} parent=5 // pred_fallthru
      _
    %p252 = scmp.le.s32.totalorder 1, %s12
    %p253 = scmp.lt.s32.totalorder %s12, 3
    %p254 = pnand %p252, %p253
    %p255 = pneg %p254
    // Predicated region
    $region41: #{rpn_forward.1} parent=5 // pred_check
      _
    $region42: #{rpn_forward.1} parent=5 // pred_check_branch
      %257 = sbr.rel (%p254) target = $region44
    $region43: #{rpn_forward.1} parent=5 // pred_region
      %s258 = ssub.s32 %s12, 1
      %s259 = smul.u32 2, %s22
      %p260 = scmp.lt.s32.totalorder %s21, 1
      %s261 = scalar_select %p260, %s21, 1
      %p262 = scmp.lt.s32.totalorder %s259, 1
      %s263 = scalar_select %p262, %s259, 1
      %s264 = smul.addr %s261, 2
      %s265 = sadd.s32 %s263, %s264
      %s266 = smul.addr %s265, 8
      %s267 = scalar_lea.vmem %s0, %s266
      %p268 = pneg %p52
      %p269 = pneg %p49
      %p270 = scmp.lt.s32.totalorder %s21, 1
      %s271 = scalar_select %p270, %s21, 1
      %s272 = smul.addr %s271, 2
      %s273 = smul.addr %s272, 8
      %s274 = scalar_lea.vmem %s1, %s273
      %p275 = pneg %p78
      %p276 = pneg %p75
      %p277 = scmp.lt.s32.totalorder %s21, 1
      %s278 = scalar_select %p277, %s21, 1
      %s279 = smul.addr %s278, 2
      %s280 = smul.addr %s279, 8
      %s281 = scalar_lea.vmem %s2, %s280
      %p282 = pneg %p104
      %p283 = pneg %p101
      %p284 = pneg %p125
      %p285 = pneg %p122
      %p286 = pneg %p146
      %p287 = pneg %p143
      %p288 = pneg %p167
      %p289 = pneg %p164
      %p290 = pneg %p195
      %p291 = pneg %p192
      %s292 = smul.u32 2, %s22
      %p293 = scmp.lt.s32.totalorder %s21, 1
      %s294 = scalar_select %p293, %s21, 1
      %p295 = scmp.lt.s32.totalorder %s292, 1
      %s296 = scalar_select %p295, %s292, 1
      %s297 = smul.addr %s294, 2
      %s298 = sadd.s32 %s296, %s297
      %s299 = smul.addr %s298, 8
      %s300 = scalar_lea.vmem %s6, %s299
      %s301 = smul.u32 2, %s22
      %p302 = scmp.lt.s32.totalorder %s21, 1
      %s303 = scalar_select %p302, %s21, 1
      %p304 = scmp.lt.s32.totalorder %s301, 1
      %s305 = scalar_select %p304, %s301, 1
      %s306 = smul.addr %s303, 2
      %s307 = sadd.s32 %s305, %s306
      %s308 = smul.addr %s307, 8
      %s309 = scalar_lea.vmem %s0, %s308
      %s310 = smul.u32 2, %s22
      %p311 = scmp.lt.s32.totalorder %s21, 1
      %s312 = scalar_select %p311, %s21, 1
      %s313 = smul.addr %s312, 2
      %s314 = smul.addr %s313, 8
      %s315 = scalar_lea.vmem %s1, %s314
      %p316 = scmp.lt.s32.totalorder %s21, 1
      %s317 = scalar_select %p316, %s21, 1
      %s318 = smul.addr %s317, 2
      %s319 = smul.addr %s318, 8
      %s320 = scalar_lea.vmem %s2, %s319
      %s321 = smul.u32 2, %s22
      %p322 = scmp.lt.s32.totalorder %s21, 1
      %s323 = scalar_select %p322, %s21, 1
      %p324 = scmp.lt.s32.totalorder %s321, 1
      %s325 = scalar_select %p324, %s321, 1
      %s326 = smul.addr %s323, 2
      %s327 = sadd.s32 %s325, %s326
      %s328 = smul.addr %s327, 8
      %s329 = scalar_lea.vmem %s6, %s328
      %s330 = smul.u32 2, %s22
      %v334 = vld [vmem:[%s309] sm:$0xff]
      %v335 = vld [vmem:[%s309 + $0x8] sm:$0xff]
      %v336 = vpack.c.bf16 %v335, %v334
      %v337 = vld [vmem:[%s315 + $0x7] sm:$0x1]
      %v338 = vpack.c.bf16 %v337, %v337
      %v339 = vld [vmem:[%s320] sm:$0x1]
      %v340 = vpack.c.bf16 %v339, %v339
      %v341 = vlaneseq
      %v342 = vshrl.u32 %v341, 7
      %v343 = vadd.s32 %v342, 8
      %s344 = smul.u32 %s22, 16
      %v345 = vstv %s344
      %v346 = vadd.s32 %v342, %v345
      %v347 = vadd.s32 %v343, %v345
      %vm348 = vcmp.eq.s32.totalorder %v346, 0
      %vm349 = vcmp.eq.s32.totalorder %v347, 0
      %vm350 = vcmp.eq.s32.totalorder %v342, 0
      %vm351 = vcmp.eq.s32.totalorder %v343, 0
      %v353 = vshrl.u32 %v336, 16
      %v355 = vrot.slane %v353, 7
      %v357 = vshll.u32 %v336, 16
      %v359 = vor.u32 %v355, %v357
      %vm361 = vcmask 1040384
      %vm362 = vsmask.f32 256
      %vm363 = vmand %vm361, %vm362
      %v364 = vsel %vm363, %v355, %v359
      %v365 = vsel %vm350, 1, 0
      %v366 = vsel %vm351, 1, 0
      %vm367 = vcmp.eq.s32.totalorder %v365, 1
      %vm368 = vcmp.eq.s32.totalorder %v366, 1
      %v370 = vpack.i.b16 %v338, %v338
      %v372 = vlaneseq
      %v373 = vshrl.u32 %v372, 7
      %v374 = vsub.s32 0, %v373
      %v375 = vrot.slane %v370, %v374
      %vm376 = vmpackc.low %vm367, %vm367
      %vm377 = vmpackc.low %vm368, %vm368
      %v378 = vsel %vm376, 65537, 0
      %v379 = vsel %vm377, 65537, 0
      %v380 = vunpack.c.l.b16 %v378
      %v381 = vunpack.c.l.b16 %v379
      %v382 = vpack.c.b16 %v381, %v380
      %vm383 = vcmp.ne.s16.totalorder %v382, 0
      %v384 = vsel %vm383, %v375, %v364
      %v385 = vsel %vm348, 1, 0
      %v386 = vsel %vm349, 1, 0
      %vm387 = vcmp.eq.s32.totalorder %v385, 1
      %vm388 = vcmp.eq.s32.totalorder %v386, 1
      %vm389 = vmpackc.low %vm387, %vm387
      %vm390 = vmpackc.low %vm388, %vm388
      %v391 = vsel %vm389, 65537, 0
      %v392 = vsel %vm390, 65537, 0
      %v393 = vunpack.c.l.b16 %v391
      %v394 = vunpack.c.l.b16 %v392
      %v395 = vpack.c.b16 %v394, %v393
      %vm396 = vcmp.ne.s16.totalorder %v395, 0
      %v397 = vsel %vm396, 0, %v384
      %vm398 = vcmp.eq.s32.totalorder %v346, 15
      %vm399 = vcmp.eq.s32.totalorder %v347, 15
      %vm400 = vcmp.eq.s32.totalorder %v342, 15
      %vm401 = vcmp.eq.s32.totalorder %v343, 15
      %v402 = vrot.slane %v357, 1
      %v403 = vor.u32 %v353, %v402
      %vm406 = vcmask 1047552
      %vm407 = vsmask.f32 7424
      %vm408 = vmand %vm406, %vm407
      %v409 = vsel %vm408, %v403, %v402
      %v410 = vsel %vm400, 1, 0
      %v411 = vsel %vm401, 1, 0
      %vm412 = vcmp.eq.s32.totalorder %v410, 1
      %vm413 = vcmp.eq.s32.totalorder %v411, 1
      %v415 = vpack.i.b16 %v340, %v340
      %v417 = vlaneseq
      %v418 = vshrl.u32 %v417, 7
      %v419 = vsub.s32 0, %v418
      %v420 = vrot.slane %v415, %v419
      %vm421 = vmpackc.low %vm412, %vm412
      %vm422 = vmpackc.low %vm413, %vm413
      %v423 = vsel %vm421, 65537, 0
      %v424 = vsel %vm422, 65537, 0
      %v425 = vunpack.c.l.b16 %v423
      %v426 = vunpack.c.l.b16 %v424
      %v427 = vpack.c.b16 %v426, %v425
      %vm428 = vcmp.ne.s16.totalorder %v427, 0
      %v429 = vsel %vm428, %v420, %v409
      %v430 = vsel %vm398, 1, 0
      %v431 = vsel %vm399, 1, 0
      %vm432 = vcmp.eq.s32.totalorder %v430, 1
      %vm433 = vcmp.eq.s32.totalorder %v431, 1
      %vm434 = vmpackc.low %vm432, %vm432
      %vm435 = vmpackc.low %vm433, %vm433
      %v436 = vsel %vm434, 65537, 0
      %v437 = vsel %vm435, 65537, 0
      %v438 = vunpack.c.l.b16 %v436
      %v439 = vunpack.c.l.b16 %v437
      %v440 = vpack.c.b16 %v439, %v438
      %vm441 = vcmp.ne.s16.totalorder %v440, 0
      %v442 = vsel %vm441, 0, %v429
      %v443 = vld [vmem:[%s5] sm:$0x1]
      %v444 = vld [vmem:[%s3] sm:$0xf]
      %v445 = vld [vmem:[%s3 + $0x4] sm:$0xf]
      %v446 = vld [vmem:[%s3 + $0x8] sm:$0xf]
      %v447 = vld [vmem:[%s3 + $0xc] sm:$0xf]
      %s448 = scalar_lea.vmem %s3, 16
      %v449 = vld [vmem:[%s448] sm:$0xf]
      %v450 = vld [vmem:[%s448 + $0x4] sm:$0xf]
      %v451 = vld [vmem:[%s448 + $0x8] sm:$0xf]
      %v452 = vld [vmem:[%s448 + $0xc] sm:$0xf]
      %v457 = vunpack.c.l.b16 %v449
      %v458 = vunpack.c.l.b16 %v450
      %v459 = vunpack.c.l.b16 %v451
      %v460 = vunpack.c.l.b16 %v452
      %v461 = vpack.c.b16 %v458, %v457
      %v462 = vpack.c.b16 %v460, %v459
      %vm465 = vcmask 261120
      %v466 = vsel %vm465, %v336, 0
      %468 = vmatprep.subr.bf16.mxu0 0
      %469 = vmatpush1.bf16.msra.mxu0 %v461
      %470 = vmatprep.subr.bf16.mxu0 0
      %471 = vmatpush1.bf16.msra.mxu0 %v462
      %472 = vmatprep.subr.bf16.mxu0 0
      %473 = vmatpush1.bf16.msra.mxu0 0
      %474 = vmatprep.subr.bf16.mxu0 0
      %475 = vmatpush1.bf16.msra.mxu0 0
      %476 = vmatprep.subr.bf16.mxu0 0
      %477 = vmatpush1.bf16.msra.mxu0 0
      %478 = vmatprep.subr.bf16.mxu0 0
      %479 = vmatpush1.bf16.msra.mxu0 0
      %480 = vmatprep.subr.bf16.mxu0 0
      %481 = vmatpush1.bf16.msra.mxu0 0
      %482 = vmatprep.subr.bf16.mxu0 0
      %483 = vmatpush1.bf16.msra.mxu0 0
      %484 = vmatprep.subr.bf16.mxu0 0
      %485 = vmatpush1.bf16.msra.mxu0 0
      %486 = vmatprep.subr.bf16.mxu0 0
      %487 = vmatpush1.bf16.msra.mxu0 0
      %488 = vmatprep.subr.bf16.mxu0 0
      %489 = vmatpush1.bf16.msra.mxu0 0
      %490 = vmatprep.subr.bf16.mxu0 0
      %491 = vmatpush1.bf16.msra.mxu0 0
      %492 = vmatprep.subr.bf16.mxu0 0
      %493 = vmatpush1.bf16.msra.mxu0 0
      %494 = vmatprep.subr.bf16.mxu0 0
      %495 = vmatpush1.bf16.msra.mxu0 0
      %496 = vmatprep.subr.bf16.mxu0 0
      %497 = vmatpush1.bf16.msra.mxu0 0
      %498 = vmatprep.subr.bf16.mxu0 0
      %499 = vmatpush1.bf16.msra.mxu0 0
      %500 = vmatprep.mubr.bf16.mxu0 0
      %501 = vmatmul.mubr.bf16.gmra.mrb[0].mxu0 %v466
      %v502 = vpop.f32.mrb[0].mxu0
      %v503 = vadd.f32 0.0, %v502
      %v504 = vpop.f32.mrb[0].mxu0
      %v505 = vpop.f32.mrb[0].mxu0
      %v506 = vadd.f32 0.0, %v505
      %v507 = vpop.f32.mrb[0].mxu0
      %508 = vdwg.mxu0
      %v513 = vunpack.c.l.b16 %v444
      %v514 = vunpack.c.l.b16 %v445
      %v515 = vunpack.c.l.b16 %v446
      %v516 = vunpack.c.l.b16 %v447
      %v517 = vpack.c.b16 %v514, %v513
      %v518 = vpack.c.b16 %v516, %v515
      %v522 = vsel %vm465, %v397, 0
      %524 = vmatprep.subr.bf16.mxu0 0
      %525 = vmatpush1.bf16.msra.mxu0 %v517
      %526 = vmatprep.subr.bf16.mxu0 0
      %527 = vmatpush1.bf16.msra.mxu0 %v518
      %528 = vmatprep.subr.bf16.mxu0 0
      %529 = vmatpush1.bf16.msra.mxu0 0
      %530 = vmatprep.subr.bf16.mxu0 0
      %531 = vmatpush1.bf16.msra.mxu0 0
      %532 = vmatprep.subr.bf16.mxu0 0
      %533 = vmatpush1.bf16.msra.mxu0 0
      %534 = vmatprep.subr.bf16.mxu0 0
      %535 = vmatpush1.bf16.msra.mxu0 0
      %536 = vmatprep.subr.bf16.mxu0 0
      %537 = vmatpush1.bf16.msra.mxu0 0
      %538 = vmatprep.subr.bf16.mxu0 0
      %539 = vmatpush1.bf16.msra.mxu0 0
      %540 = vmatprep.subr.bf16.mxu0 0
      %541 = vmatpush1.bf16.msra.mxu0 0
      %542 = vmatprep.subr.bf16.mxu0 0
      %543 = vmatpush1.bf16.msra.mxu0 0
      %544 = vmatprep.subr.bf16.mxu0 0
      %545 = vmatpush1.bf16.msra.mxu0 0
      %546 = vmatprep.subr.bf16.mxu0 0
      %547 = vmatpush1.bf16.msra.mxu0 0
      %548 = vmatprep.subr.bf16.mxu0 0
      %549 = vmatpush1.bf16.msra.mxu0 0
      %550 = vmatprep.subr.bf16.mxu0 0
      %551 = vmatpush1.bf16.msra.mxu0 0
      %552 = vmatprep.subr.bf16.mxu0 0
      %553 = vmatpush1.bf16.msra.mxu0 0
      %554 = vmatprep.subr.bf16.mxu0 0
      %555 = vmatpush1.bf16.msra.mxu0 0
      %556 = vmatprep.mubr.bf16.mxu0 0
      %557 = vmatmul.mubr.bf16.gmra.mrb[0].mxu0 %v522
      %v558 = vpop.f32.mrb[0].mxu0
      %v559 = vadd.f32 %v503, %v558
      %v560 = vpop.f32.mrb[0].mxu0
      %v561 = vpop.f32.mrb[0].mxu0
      %v562 = vadd.f32 %v506, %v561
      %v563 = vpop.f32.mrb[0].mxu0
      %564 = vdwg.mxu0
      %s565 = scalar_lea.vmem %s3, 32
      %v566 = vld [vmem:[%s565] sm:$0xf]
      %v567 = vld [vmem:[%s565 + $0x4] sm:$0xf]
      %v568 = vld [vmem:[%s565 + $0x8] sm:$0xf]
      %v569 = vld [vmem:[%s565 + $0xc] sm:$0xf]
      %v574 = vunpack.c.l.b16 %v566
      %v575 = vunpack.c.l.b16 %v567
      %v576 = vunpack.c.l.b16 %v568
      %v577 = vunpack.c.l.b16 %v569
      %v578 = vpack.c.b16 %v575, %v574
      %v579 = vpack.c.b16 %v577, %v576
      %v583 = vsel %vm465, %v442, 0
      %585 = vmatprep.subr.bf16.mxu0 0
      %586 = vmatpush1.bf16.msra.mxu0 %v578
      %587 = vmatprep.subr.bf16.mxu0 0
      %588 = vmatpush1.bf16.msra.mxu0 %v579
      %589 = vmatprep.subr.bf16.mxu0 0
      %590 = vmatpush1.bf16.msra.mxu0 0
      %591 = vmatprep.subr.bf16.mxu0 0
      %592 = vmatpush1.bf16.msra.mxu0 0
      %593 = vmatprep.subr.bf16.mxu0 0
      %594 = vmatpush1.bf16.msra.mxu0 0
      %595 = vmatprep.subr.bf16.mxu0 0
      %596 = vmatpush1.bf16.msra.mxu0 0
      %597 = vmatprep.subr.bf16.mxu0 0
      %598 = vmatpush1.bf16.msra.mxu0 0
      %599 = vmatprep.subr.bf16.mxu0 0
      %600 = vmatpush1.bf16.msra.mxu0 0
      %601 = vmatprep.subr.bf16.mxu0 0
      %602 = vmatpush1.bf16.msra.mxu0 0
      %603 = vmatprep.subr.bf16.mxu0 0
      %604 = vmatpush1.bf16.msra.mxu0 0
      %605 = vmatprep.subr.bf16.mxu0 0
      %606 = vmatpush1.bf16.msra.mxu0 0
      %607 = vmatprep.subr.bf16.mxu0 0
      %608 = vmatpush1.bf16.msra.mxu0 0
      %609 = vmatprep.subr.bf16.mxu0 0
      %610 = vmatpush1.bf16.msra.mxu0 0
      %611 = vmatprep.subr.bf16.mxu0 0
      %612 = vmatpush1.bf16.msra.mxu0 0
      %613 = vmatprep.subr.bf16.mxu0 0
      %614 = vmatpush1.bf16.msra.mxu0 0
      %615 = vmatprep.subr.bf16.mxu0 0
      %616 = vmatpush1.bf16.msra.mxu0 0
      %617 = vmatprep.mubr.bf16.mxu0 0
      %618 = vmatmul.mubr.bf16.gmra.mrb[0].mxu0 %v583
      %v619 = vpop.f32.mrb[0].mxu0
      %v620 = vadd.f32 0.0, %v619
      %v621 = vpop.f32.mrb[0].mxu0
      %v622 = vpop.f32.mrb[0].mxu0
      %v623 = vadd.f32 0.0, %v622
      %v624 = vpop.f32.mrb[0].mxu0
      %625 = vdwg.mxu0
      %v626 = vadd.f32 %v559, %v620
      %v627 = vadd.f32 %v562, %v623
      %v629 = vlaneseq
      %v630 = vshrl.u32 %v629, 7
      %v631 = vsub.s32 0, %v630
      %v632 = vrot.slane %v443, %v631
      %v634 = vadd.f32 %v626, %v632
      %v635 = vadd.f32 %v627, %v632
      %v636 = vmax.f32 %v634, 0.0
      %v637 = vmax.f32 %v635, 0.0
      %v638 = vpack.c.bf16 %v637, %v636
      %v639 = vld [vmem:[%s4] sm:$0xf]
      %v640 = vld [vmem:[%s4 + $0x4] sm:$0xf]
      %v641 = vld [vmem:[%s4 + $0x8] sm:$0xf]
      %v642 = vld [vmem:[%s4 + $0xc] sm:$0xf]
      %v647 = vunpack.c.l.b16 %v639
      %v648 = vunpack.c.l.b16 %v640
      %v649 = vunpack.c.l.b16 %v641
      %v650 = vunpack.c.l.b16 %v642
      %v651 = vpack.c.b16 %v648, %v647
      %v652 = vpack.c.b16 %v650, %v649
      %655 = vrot.lane.b32.xlu0 %v632, 96
      %v656 = vpop.permute.xlu0 %655
      %v659 = vsel %vm465, %v638, 0
      %661 = vmatprep.subr.bf16.mxu0 0
      %662 = vmatpush1.bf16.msra.mxu0 %v651
      %663 = vmatprep.subr.bf16.mxu0 0
      %664 = vmatpush1.bf16.msra.mxu0 %v652
      %665 = vmatprep.subr.bf16.mxu0 0
      %666 = vmatpush1.bf16.msra.mxu0 0
      %667 = vmatprep.subr.bf16.mxu0 0
      %668 = vmatpush1.bf16.msra.mxu0 0
      %669 = vmatprep.subr.bf16.mxu0 0
      %670 = vmatpush1.bf16.msra.mxu0 0
      %671 = vmatprep.subr.bf16.mxu0 0
      %672 = vmatpush1.bf16.msra.mxu0 0
      %673 = vmatprep.subr.bf16.mxu0 0
      %674 = vmatpush1.bf16.msra.mxu0 0
      %675 = vmatprep.subr.bf16.mxu0 0
      %676 = vmatpush1.bf16.msra.mxu0 0
      %677 = vmatprep.subr.bf16.mxu0 0
      %678 = vmatpush1.bf16.msra.mxu0 0
      %679 = vmatprep.subr.bf16.mxu0 0
      %680 = vmatpush1.bf16.msra.mxu0 0
      %681 = vmatprep.subr.bf16.mxu0 0
      %682 = vmatpush1.bf16.msra.mxu0 0
      %683 = vmatprep.subr.bf16.mxu0 0
      %684 = vmatpush1.bf16.msra.mxu0 0
      %685 = vmatprep.subr.bf16.mxu0 0
      %686 = vmatpush1.bf16.msra.mxu0 0
      %687 = vmatprep.subr.bf16.mxu0 0
      %688 = vmatpush1.bf16.msra.mxu0 0
      %689 = vmatprep.subr.bf16.mxu0 0
      %690 = vmatpush1.bf16.msra.mxu0 0
      %691 = vmatprep.subr.bf16.mxu0 0
      %692 = vmatpush1.bf16.msra.mxu0 0
      %693 = vmatprep.mubr.bf16.mxu0 0
      %694 = vmatmul.mubr.bf16.gmra.mrb[0].mxu0 %v659
      %v695 = vpop.f32.mrb[0].mxu0
      %v696 = vadd.f32 %v656, %v695
      %v697 = vpop.f32.mrb[0].mxu0
      %v698 = vpop.f32.mrb[0].mxu0
      %v699 = vadd.f32 %v656, %v698
      %v700 = vpop.f32.mrb[0].mxu0
      %701 = vdwg.mxu0
      %vm702 = vcmask 72704
      %703 = vst.msk [vmem:[%s329] sm:$0xff] %vm702, %v696
      %704 = vst.msk [vmem:[%s329 + $0x8] sm:$0xff] %vm702, %v699
      %s705 = smul.u32 2, %s22
      %p706 = scmp.lt.s32.totalorder %s21, 1
      %s707 = scalar_select %p706, %s21, 1
      %p708 = scmp.lt.s32.totalorder %s705, 1
      %s709 = scalar_select %p708, %s705, 1
      %s710 = smul.addr %s707, 2
      %s711 = sadd.s32 %s709, %s710
      %s712 = smul.addr %s711, 8
      %s713 = scalar_lea.vmem %s6, %s712
      // Predicated region
      $region45: #{rpn_forward.1} parent=43 // pred_check
        %p714 = pneg %p192
      $region46: #{rpn_forward.1} parent=43 // pred_check_branch
        %716 = sbr.rel (%p714) target = $region48
      $region47: #{rpn_forward.1} parent=43 // pred_region
        %s717 = smul.u32 2, %s22
      $region48: #{rpn_forward.1} parent=43 // pred_fallthru
        _
    $region44: #{rpn_forward.1} parent=5 // pred_fallthru
      _
    %p718 = scmp.le.s32.totalorder 2, %s12
    // Predicated region
    $region49: #{rpn_forward.1} parent=5 // pred_check
      %p719 = pneg %p718
    $region50: #{rpn_forward.1} parent=5 // pred_check_branch
      %721 = sbr.rel (%p719) target = $region52
    $region51: #{rpn_forward.1} parent=5 // pred_region
      %s722 = ssub.s32 %s12, 2
      // Predicated region
      $region53: #{rpn_forward.1} parent=51 // pred_check
        %p723 = pneg %p198
      $region54: #{rpn_forward.1} parent=51 // pred_check_branch
        %725 = sbr.rel (%p723) target = $region56
      $region55: #{rpn_forward.1} parent=51 // pred_region
        %s726 = smul.u32 2, %s24
        %p727 = scmp.lt.s32.totalorder %s23, 1
        %s728 = scalar_select %p727, %s23, 1
        %p729 = scmp.lt.s32.totalorder %s726, 1
        %s730 = scalar_select %p729, %s726, 1
        %s731 = smul.addr %s728, 2
        %s732 = sadd.s32 %s730, %s731
        %s733 = smul.addr %s732, 8
        %s734 = scalar_lea.vmem %s6, %s733
      $region56: #{rpn_forward.1} parent=51 // pred_fallthru
        _
    $region52: #{rpn_forward.1} parent=5 // pred_fallthru
      _
  $region6: #{rpn_forward.1} parent=0 // loop_footer
    %s16 = sadd.s32 1, %s12
  $region7: #{rpn_forward.1} parent=0 // loop_footer_branch
    %11 = sbr.rel target = $region3
  $region8: #{rpn_forward.1} parent=0 // loop_exit
    _

</llo_original>
